<compile_context>
chip_gen: v6e
topology: v6e:2x2x1
jax: 0.10.0
libtpu: 0.0.40
codegen_flags: <defaults>
</compile_context>

<pallas_src>
import math

import jax
import jax.numpy as jnp
from jax.experimental import pallas as pl
from jax.experimental.pallas import tpu as pltpu


def _round_up(x: int, m: int) -> int:
    return ((x + m - 1) // m) * m


def regression_head_kernel(x_ref,
                           w1_ref, b1_ref,
                           w2_ref, b2_ref,
                           w3_ref, b3_ref,
                           w4t_ref, b4_ref,
                           o_ref):
    # x tile: (TM, D) bf16.  w1..w3: bf16.  b1..b3, w4t, b4: f32.
    x = x_ref[...]

    h1 = jnp.dot(x, w1_ref[...], preferred_element_type=jnp.float32) + b1_ref[...]
    h1 = jnp.maximum(h1, 0.0).astype(jnp.bfloat16)

    h2 = jnp.dot(h1, w2_ref[...], preferred_element_type=jnp.float32) + b2_ref[...]
    h2 = jnp.maximum(h2, 0.0).astype(jnp.bfloat16)

    h3 = jnp.dot(h2, w3_ref[...], preferred_element_type=jnp.float32) + b3_ref[...]
    h3 = jnp.maximum(h3, 0.0)               # keep f32 for the final (tiny) layer

    # Final layer (output width 1): contract against h3^T so the result comes out
    # as a lane-dense (1, TM) row instead of an N=1 column -> unmasked stores and
    # no (TM, K) @ (K, 1) matmul occupying a single MXU column.
    h4 = jnp.dot(w4t_ref[...], h3.T, preferred_element_type=jnp.float32)  # (1, TM)
    h4 = h4 + b4_ref[...]                                                  # (1, 1) bcast

    o_ref[...] = h4[None].astype(o_ref.dtype)       # output block: (1, 1, TM)


def regression_head(x, params, *, block_rows=None):
    """x: [seq_len, batch, d_embedding]. params: w1..w4 ([in, out]), b1..b4 ([1, out]).

    Returns [seq_len, batch, 1] float32.
    """
    seq_len, batch, d = x.shape
    d1, d2, d3 = d // 2, d // 4, d // 8
    m = seq_len * batch

    # Row-tile: multiple of 128 (dense lanes for the (1, TM) output row; also a
    # multiple of 8 sublanes for the (TM, D) x block).  512 keeps the
    # double-buffered bf16 x tile + resident weights + f32 intermediates well
    # inside every generation's VMEM budget even for D ~ 1-2K.
    if block_rows is None:
        block_rows = min(512, _round_up(m, 128))
    block_rows = _round_up(block_rows, 128)
    m_pad = _round_up(m, block_rows)
    num_tiles = m_pad // block_rows

    # bf16 MXU operands (halves HBM traffic for x / weights); f32 accumulation
    # happens inside the kernel.
    x2d = x.reshape(m, d).astype(jnp.bfloat16)
    if m_pad != m:
        x2d = jnp.pad(x2d, ((0, m_pad - m), (0, 0)))

    w1 = params["w1"].astype(jnp.bfloat16)
    w2 = params["w2"].astype(jnp.bfloat16)
    w3 = params["w3"].astype(jnp.bfloat16)
    b1 = params["b1"].astype(jnp.float32)
    b2 = params["b2"].astype(jnp.float32)
    b3 = params["b3"].astype(jnp.float32)
    w4t = params["w4"].reshape(1, d3).astype(jnp.float32)   # (1, D//8) row
    b4 = params["b4"].reshape(1, 1).astype(jnp.float32)

    # Explicit per-operand BlockSpecs (no late-bound closure over a loop variable).
    in_specs = [
        pl.BlockSpec((block_rows, d), lambda i: (i, 0)),   # x: tiled over rows
        pl.BlockSpec((d, d1), lambda i: (0, 0)),           # w1 (VMEM-resident)
        pl.BlockSpec((1, d1), lambda i: (0, 0)),           # b1
        pl.BlockSpec((d1, d2), lambda i: (0, 0)),          # w2
        pl.BlockSpec((1, d2), lambda i: (0, 0)),           # b2
        pl.BlockSpec((d2, d3), lambda i: (0, 0)),          # w3
        pl.BlockSpec((1, d3), lambda i: (0, 0)),           # b3
        pl.BlockSpec((1, d3), lambda i: (0, 0)),           # w4 as a row
        pl.BlockSpec((1, 1), lambda i: (0, 0)),            # b4
    ]
    # Lane-dense output: each grid step writes one (1, TM) row of scalars.
    out_specs = pl.BlockSpec((1, 1, block_rows), lambda i: (i, 0, 0))
    out_shape = jax.ShapeDtypeStruct((num_tiles, 1, block_rows), jnp.float32)

    # Explicit VMEM budget with headroom; capped so it is v7x-safe (<= 64 MiB).
    est_bytes = (
        2 * block_rows * d * 2                        # x double buffer (bf16)
        + 2 * block_rows * 4                          # output double buffer (f32)
        + 2 * (d * d1 + d1 * d2 + d2 * d3) * 2        # resident bf16 weights
        + 2 * (d1 + d2 + 2 * d3 + 1) * 4              # biases + w4 row
        + 2 * block_rows * (d1 + d2 + d3) * 4         # live intermediates (generous)
    )
    vmem_limit = int(min(64 * 1024 * 1024, max(2 * est_bytes, 16 * 1024 * 1024)))

    flops = 2 * m_pad * (d * d1 + d1 * d2 + d2 * d3 + d3)
    bytes_accessed = (
        x2d.size * x2d.dtype.itemsize
        + sum(a.size * a.dtype.itemsize for a in (w1, b1, w2, b2, w3, b3, w4t, b4))
        + num_tiles * block_rows * 4
    )

    out = pl.pallas_call(
        regression_head_kernel,
        out_shape=out_shape,
        grid=(num_tiles,),
        in_specs=in_specs,
        out_specs=out_specs,
        compiler_params=pltpu.CompilerParams(
            dimension_semantics=("parallel",),    # row tiles independent -> both TCs on v7x
            vmem_limit_bytes=vmem_limit,
        ),
        cost_estimate=pl.CostEstimate(
            flops=flops, transcendentals=0, bytes_accessed=bytes_accessed),
    )(x2d, w1, b1, w2, b2, w3, b3, w4t, b4)

    return out.reshape(m_pad)[:m].reshape(seq_len, batch, 1)


def init_params(d_embedding: int, key):
    """Deterministic init matching nn.Linear shapes (weights stored as [in, out])."""
    dims = [d_embedding, d_embedding // 2, d_embedding // 4, d_embedding // 8, 1]
    params = {}
    keys = jax.random.split(key, 8)
    for i in range(4):
        fan_in, fan_out = dims[i], dims[i + 1]
        bound = 1.0 / math.sqrt(fan_in)
        params[f"w{i + 1}"] = jax.random.uniform(
            keys[2 * i], (fan_in, fan_out), minval=-bound, maxval=bound,
            dtype=jnp.float32)
        params[f"b{i + 1}"] = jax.random.uniform(
            keys[2 * i + 1], (1, fan_out), minval=-bound, maxval=bound,
            dtype=jnp.float32)
    return params


def _reference(x, params):
    """Pure-JAX reference that emulates the kernel's precision path
    (bf16 MXU inputs, f32 accumulation, f32 bias/ReLU)."""
    seq_len, batch, d = x.shape
    h = x.reshape(-1, d).astype(jnp.bfloat16)
    h = jnp.dot(h, params["w1"].astype(jnp.bfloat16),
                preferred_element_type=jnp.float32) + params["b1"]
    h = jnp.maximum(h, 0.0).astype(jnp.bfloat16)
    h = jnp.dot(h, params["w2"].astype(jnp.bfloat16),
                preferred_element_type=jnp.float32) + params["b2"]
    h = jnp.maximum(h, 0.0).astype(jnp.bfloat16)
    h = jnp.dot(h, params["w3"].astype(jnp.bfloat16),
                preferred_element_type=jnp.float32) + params["b3"]
    h = jnp.maximum(h, 0.0)
    out = jnp.dot(h, params["w4"], preferred_element_type=jnp.float32) + params["b4"]
    return out.reshape(seq_len, batch, 1)


if __name__ == "__main__":
    seq_len, batch, d_embedding = 8, 2, 32

    key = jax.random.PRNGKey(0)
    k_x, k_p = jax.random.split(key)

    x = jax.random.normal(k_x, (seq_len, batch, d_embedding), dtype=jnp.float32)
    params = init_params(d_embedding, k_p)

    out = regression_head(x, params)
    out = jax.block_until_ready(out)

    expected = _reference(x, params)
    assert out.shape == (seq_len, batch, 1), out.shape
    assert jnp.allclose(out, expected, atol=1e-4, rtol=1e-4), (
        "mismatch vs precision-matched reference: "
        f"max abs err = {float(jnp.max(jnp.abs(out - expected)))}")

    print("KERNEL_OK")
</pallas_src>

<mosaic_0001>
module attributes {stable_mosaic.version = 11 : i64} {
  func.func @regression_head_kernel(%arg0: i32, %arg1: memref<128x32xbf16, #tpu.memory_space<vmem>>, %arg2: memref<32x16xbf16, #tpu.memory_space<vmem>>, %arg3: memref<1x16xf32, #tpu.memory_space<vmem>>, %arg4: memref<16x8xbf16, #tpu.memory_space<vmem>>, %arg5: memref<1x8xf32, #tpu.memory_space<vmem>>, %arg6: memref<8x4xbf16, #tpu.memory_space<vmem>>, %arg7: memref<1x4xf32, #tpu.memory_space<vmem>>, %arg8: memref<1x4xf32, #tpu.memory_space<vmem>>, %arg9: memref<1x1xf32, #tpu.memory_space<vmem>>, %arg10: memref<1x1x128xf32, #tpu.memory_space<vmem>>) attributes {dimension_semantics = [#tpu.dimension_semantics<parallel>], iteration_bounds = array<i64: 1>, scalar_prefetch = 0 : i64, scratch_operands = 0 : i64, tpu.core_type = #tpu.core_type<tc>, window_params = [{transform_indices = @transform_0, window_bounds = array<i64: 128, 32>}, {pipeline_mode = #tpu.pipeline_mode<synchronous>, transform_indices = @transform_1, window_bounds = array<i64: 32, 16>}, {pipeline_mode = #tpu.pipeline_mode<synchronous>, transform_indices = @transform_2, window_bounds = array<i64: 1, 16>}, {pipeline_mode = #tpu.pipeline_mode<synchronous>, transform_indices = @transform_3, window_bounds = array<i64: 16, 8>}, {pipeline_mode = #tpu.pipeline_mode<synchronous>, transform_indices = @transform_4, window_bounds = array<i64: 1, 8>}, {pipeline_mode = #tpu.pipeline_mode<synchronous>, transform_indices = @transform_5, window_bounds = array<i64: 8, 4>}, {pipeline_mode = #tpu.pipeline_mode<synchronous>, transform_indices = @transform_6, window_bounds = array<i64: 1, 4>}, {pipeline_mode = #tpu.pipeline_mode<synchronous>, transform_indices = @transform_7, window_bounds = array<i64: 1, 4>}, {pipeline_mode = #tpu.pipeline_mode<synchronous>, transform_indices = @transform_8, window_bounds = array<i64: 1, 1>}, {transform_indices = @transform_9, window_bounds = array<i64: 1, 1, 128>}]} {
    %c0 = arith.constant 0 : index
    %c0_0 = arith.constant 0 : index
    %0 = vector.load %arg1[%c0, %c0_0] : memref<128x32xbf16, #tpu.memory_space<vmem>>, vector<128x32xbf16>
    %c0_1 = arith.constant 0 : index
    %c0_2 = arith.constant 0 : index
    %1 = vector.load %arg2[%c0_1, %c0_2] : memref<32x16xbf16, #tpu.memory_space<vmem>>, vector<32x16xbf16>
    %cst = arith.constant dense<0.000000e+00> : vector<128x16xf32>
    %2 = tpu.matmul %0, %1, %cst {dimension_numbers = #tpu.dot_dimension_numbers<[1], [0], [0], [1], [0, 0, 1, 1], [], []>} : vector<128x32xbf16>, vector<32x16xbf16>, vector<128x16xf32> -> vector<128x16xf32>
    %c0_3 = arith.constant 0 : index
    %c0_4 = arith.constant 0 : index
    %3 = vector.load %arg3[%c0_3, %c0_4] : memref<1x16xf32, #tpu.memory_space<vmem>>, vector<1x16xf32>
    %4 = vector.broadcast %3 : vector<1x16xf32> to vector<128x16xf32>
    %5 = arith.addf %2, %4 : vector<128x16xf32>
    %cst_5 = arith.constant 0.000000e+00 : f32
    %6 = vector.broadcast %cst_5 : f32 to vector<128x16xf32>
    %7 = arith.maximumf %5, %6 : vector<128x16xf32>
    %8 = arith.truncf %7 : vector<128x16xf32> to vector<128x16xbf16>
    %c0_6 = arith.constant 0 : index
    %c0_7 = arith.constant 0 : index
    %9 = vector.load %arg4[%c0_6, %c0_7] : memref<16x8xbf16, #tpu.memory_space<vmem>>, vector<16x8xbf16>
    %cst_8 = arith.constant dense<0.000000e+00> : vector<128x8xf32>
    %10 = tpu.matmul %8, %9, %cst_8 {dimension_numbers = #tpu.dot_dimension_numbers<[1], [0], [0], [1], [0, 0, 1, 1], [], []>} : vector<128x16xbf16>, vector<16x8xbf16>, vector<128x8xf32> -> vector<128x8xf32>
    %c0_9 = arith.constant 0 : index
    %c0_10 = arith.constant 0 : index
    %11 = vector.load %arg5[%c0_9, %c0_10] : memref<1x8xf32, #tpu.memory_space<vmem>>, vector<1x8xf32>
    %12 = vector.broadcast %11 : vector<1x8xf32> to vector<128x8xf32>
    %13 = arith.addf %10, %12 : vector<128x8xf32>
    %cst_11 = arith.constant 0.000000e+00 : f32
    %14 = vector.broadcast %cst_11 : f32 to vector<128x8xf32>
    %15 = arith.maximumf %13, %14 : vector<128x8xf32>
    %16 = arith.truncf %15 : vector<128x8xf32> to vector<128x8xbf16>
    %c0_12 = arith.constant 0 : index
    %c0_13 = arith.constant 0 : index
    %17 = vector.load %arg6[%c0_12, %c0_13] : memref<8x4xbf16, #tpu.memory_space<vmem>>, vector<8x4xbf16>
    %cst_14 = arith.constant dense<0.000000e+00> : vector<128x4xf32>
    %18 = tpu.matmul %16, %17, %cst_14 {dimension_numbers = #tpu.dot_dimension_numbers<[1], [0], [0], [1], [0, 0, 1, 1], [], []>} : vector<128x8xbf16>, vector<8x4xbf16>, vector<128x4xf32> -> vector<128x4xf32>
    %c0_15 = arith.constant 0 : index
    %c0_16 = arith.constant 0 : index
    %19 = vector.load %arg7[%c0_15, %c0_16] : memref<1x4xf32, #tpu.memory_space<vmem>>, vector<1x4xf32>
    %20 = vector.broadcast %19 : vector<1x4xf32> to vector<128x4xf32>
    %21 = arith.addf %18, %20 : vector<128x4xf32>
    %cst_17 = arith.constant 0.000000e+00 : f32
    %22 = vector.broadcast %cst_17 : f32 to vector<128x4xf32>
    %23 = arith.maximumf %21, %22 : vector<128x4xf32>
    %c0_18 = arith.constant 0 : index
    %c0_19 = arith.constant 0 : index
    %24 = vector.load %arg8[%c0_18, %c0_19] : memref<1x4xf32, #tpu.memory_space<vmem>>, vector<1x4xf32>
    %25 = tpu.transpose %23, [1, 0] : vector<128x4xf32> -> vector<4x128xf32>
    %cst_20 = arith.constant dense<0.000000e+00> : vector<1x128xf32>
    %26 = tpu.matmul %24, %25, %cst_20 {dimension_numbers = #tpu.dot_dimension_numbers<[1], [0], [0], [1], [0, 0, 1, 1], [], []>} : vector<1x4xf32>, vector<4x128xf32>, vector<1x128xf32> -> vector<1x128xf32>
    %c0_21 = arith.constant 0 : index
    %c0_22 = arith.constant 0 : index
    %27 = vector.load %arg9[%c0_21, %c0_22] : memref<1x1xf32, #tpu.memory_space<vmem>>, vector<1x1xf32>
    %28 = vector.broadcast %27 : vector<1x1xf32> to vector<1x128xf32>
    %29 = arith.addf %26, %28 : vector<1x128xf32>
    %30 = vector.shape_cast %29 : vector<1x128xf32> to vector<1x1x128xf32>
    %c0_23 = arith.constant 0 : index
    %c0_24 = arith.constant 0 : index
    %c0_25 = arith.constant 0 : index
    %31 = vector.load %arg10[%c0_23, %c0_24, %c0_25] : memref<1x1x128xf32, #tpu.memory_space<vmem>>, vector<1x1x128xf32>
    tpu.vector_store %arg10[%c0_23, %c0_24, %c0_25], %30 {strides = array<i32>} : memref<1x1x128xf32, #tpu.memory_space<vmem>>, vector<1x1x128xf32>,
    return
  }
  func.func @transform_0(%arg0: i32) -> (i32, i32) {
    %c0_i32 = arith.constant 0 : i32
    %c0_i32_0 = arith.constant 0 : i32
    return %arg0, %c0_i32 : i32, i32
  }
  func.func @transform_1(%arg0: i32) -> (i32, i32) {
    %c0_i32 = arith.constant 0 : i32
    %c0_i32_0 = arith.constant 0 : i32
    %c0_i32_1 = arith.constant 0 : i32
    return %c0_i32, %c0_i32_0 : i32, i32
  }
  func.func @transform_2(%arg0: i32) -> (i32, i32) {
    %c0_i32 = arith.constant 0 : i32
    %c0_i32_0 = arith.constant 0 : i32
    %c0_i32_1 = arith.constant 0 : i32
    return %c0_i32, %c0_i32_0 : i32, i32
  }
  func.func @transform_3(%arg0: i32) -> (i32, i32) {
    %c0_i32 = arith.constant 0 : i32
    %c0_i32_0 = arith.constant 0 : i32
    %c0_i32_1 = arith.constant 0 : i32
    return %c0_i32, %c0_i32_0 : i32, i32
  }
  func.func @transform_4(%arg0: i32) -> (i32, i32) {
    %c0_i32 = arith.constant 0 : i32
    %c0_i32_0 = arith.constant 0 : i32
    %c0_i32_1 = arith.constant 0 : i32
    return %c0_i32, %c0_i32_0 : i32, i32
  }
  func.func @transform_5(%arg0: i32) -> (i32, i32) {
    %c0_i32 = arith.constant 0 : i32
    %c0_i32_0 = arith.constant 0 : i32
    %c0_i32_1 = arith.constant 0 : i32
    return %c0_i32, %c0_i32_0 : i32, i32
  }
  func.func @transform_6(%arg0: i32) -> (i32, i32) {
    %c0_i32 = arith.constant 0 : i32
    %c0_i32_0 = arith.constant 0 : i32
    %c0_i32_1 = arith.constant 0 : i32
    return %c0_i32, %c0_i32_0 : i32, i32
  }
  func.func @transform_7(%arg0: i32) -> (i32, i32) {
    %c0_i32 = arith.constant 0 : i32
    %c0_i32_0 = arith.constant 0 : i32
    %c0_i32_1 = arith.constant 0 : i32
    return %c0_i32, %c0_i32_0 : i32, i32
  }
  func.func @transform_8(%arg0: i32) -> (i32, i32) {
    %c0_i32 = arith.constant 0 : i32
    %c0_i32_0 = arith.constant 0 : i32
    %c0_i32_1 = arith.constant 0 : i32
    return %c0_i32, %c0_i32_0 : i32, i32
  }
  func.func @transform_9(%arg0: i32) -> (i32, i32, i32) {
    %c0_i32 = arith.constant 0 : i32
    %c0_i32_0 = arith.constant 0 : i32
    %c0_i32_1 = arith.constant 0 : i32
    return %arg0, %c0_i32, %c0_i32_0 : i32, i32, i32
  }
}

</mosaic_0001>

<llo_original>
// kernel: tpu_custom_call.1
$region0: #{tpu_custom_call.1}
  #allocation0 [shape = 'u32[]', space=smem, size = 0x4, offset = 0x4, fixed_abs, tag = 'smem constant byte address 0x4 - core index']
  #allocation1 [shape = 'u32[144,128]{1,0:T(1,128)}', space=vmem, size = 0x12000, scoped, tag = 'internal scratch']
  #allocation2 [shape = 'f32[1,1]{1,0:T(1,128)S(1)}', space=vmem, size = 0x200, scoped, tag = 'scoped memory for tpu_custom_call.1']
  %s0 = inlined_call_operand.vmem [shape: bf16[128,32], index: 0, kind: input, shape index: {}]
  %s1 = inlined_call_operand.vmem [shape: bf16[32,16], index: 1, kind: input, shape index: {}]
  %s2 = inlined_call_operand.vmem [shape: f32[1,16], index: 2, kind: input, shape index: {}]
  %s3 = inlined_call_operand.vmem [shape: bf16[16,8], index: 3, kind: input, shape index: {}]
  %s4 = inlined_call_operand.vmem [shape: f32[1,8], index: 4, kind: input, shape index: {}]
  %s5 = inlined_call_operand.vmem [shape: bf16[8,4], index: 5, kind: input, shape index: {}]
  %s6 = inlined_call_operand.vmem [shape: f32[1,4], index: 6, kind: input, shape index: {}]
  %s7 = inlined_call_operand.vmem [shape: f32[1,4], index: 7, kind: input, shape index: {}]
  %s8 = inlined_call_operand.<no memory space> [shape: f32[1,1], index: 8, kind: input, shape index: {}]
  %s9 = inlined_call_operand.hbm [shape: f32[1,1,128], index: 9, kind: output, shape index: {}]
  %s10 = sld [smem:[#allocation0]]
  $region46: #{tpu_custom_call.1} parent=0
    _
  %s12 = ssub.s32 1, %s10
  %s13 = scalar_select 0, %s12, %s10
  %v14 = vstv %s8
  %15 = vst [vmem:[#allocation2] sm:$0x1] %v14
  $region1: #{tpu_custom_call.1} parent=0
    #allocation3 [shape = 'u8[512]{0}', space=vmem, size = 0x400, scoped, tag = 'output window, operand 0, single buffered']
    #allocation4 [shape = 's32[1]{0}', space=sflag, size = 0x4, scoped, tag = 'scoped memory for tpu_custom_call.1']
    %16 = vsyncpa [#allocation4], 0
    // Predicated region
    $region2: #{tpu_custom_call.1} parent=1 // pred_check
      _
    $region3: #{tpu_custom_call.1} parent=1 // pred_check_branch
      %18 = sbr.rel (0) target = $region5
    $region4: #{tpu_custom_call.1} parent=1 // pred_region
      _
    $region5: #{tpu_custom_call.1} parent=1 // pred_fallthru
      _
    // Predicated region
    $region6: #{tpu_custom_call.1} parent=1 // pred_check
      _
    $region7: #{tpu_custom_call.1} parent=1 // pred_check_branch
      %20 = sbr.rel (0) target = $region9
    $region8: #{tpu_custom_call.1} parent=1 // pred_region
      _
    $region9: #{tpu_custom_call.1} parent=1 // pred_fallthru
      _
    // Predicated region
    $region10: #{tpu_custom_call.1} parent=1 // pred_check
      _
    $region11: #{tpu_custom_call.1} parent=1 // pred_check_branch
      %22 = sbr.rel (0) target = $region13
    $region12: #{tpu_custom_call.1} parent=1 // pred_region
      _
    $region13: #{tpu_custom_call.1} parent=1 // pred_fallthru
      _
    // Predicated region
    $region14: #{tpu_custom_call.1} parent=1 // pred_check
      _
    $region15: #{tpu_custom_call.1} parent=1 // pred_check_branch
      %24 = sbr.rel (0) target = $region17
    $region16: #{tpu_custom_call.1} parent=1 // pred_region
      _
    $region17: #{tpu_custom_call.1} parent=1 // pred_fallthru
      _
    // Predicated region
    $region18: #{tpu_custom_call.1} parent=1 // pred_check
      _
    $region19: #{tpu_custom_call.1} parent=1 // pred_check_branch
      %26 = sbr.rel (0) target = $region21
    $region20: #{tpu_custom_call.1} parent=1 // pred_region
      _
    $region21: #{tpu_custom_call.1} parent=1 // pred_fallthru
      _
    // Predicated region
    $region22: #{tpu_custom_call.1} parent=1 // pred_check
      _
    $region23: #{tpu_custom_call.1} parent=1 // pred_check_branch
      %28 = sbr.rel (0) target = $region25
    $region24: #{tpu_custom_call.1} parent=1 // pred_region
      _
    $region25: #{tpu_custom_call.1} parent=1 // pred_fallthru
      _
    // Predicated region
    $region26: #{tpu_custom_call.1} parent=1 // pred_check
      _
    $region27: #{tpu_custom_call.1} parent=1 // pred_check_branch
      %30 = sbr.rel (0) target = $region29
    $region28: #{tpu_custom_call.1} parent=1 // pred_region
      _
    $region29: #{tpu_custom_call.1} parent=1 // pred_fallthru
      _
    // Predicated region
    $region30: #{tpu_custom_call.1} parent=1 // pred_check
      _
    $region31: #{tpu_custom_call.1} parent=1 // pred_check_branch
      %32 = sbr.rel (0) target = $region33
    $region32: #{tpu_custom_call.1} parent=1 // pred_region
      _
    $region33: #{tpu_custom_call.1} parent=1 // pred_fallthru
      _
    // Predicated region
    $region34: #{tpu_custom_call.1} parent=1 // pred_check
      _
    $region35: #{tpu_custom_call.1} parent=1 // pred_check_branch
      %34 = sbr.rel (0) target = $region37
    $region36: #{tpu_custom_call.1} parent=1 // pred_region
      _
    $region37: #{tpu_custom_call.1} parent=1 // pred_fallthru
      _
    %v36 = vld [vmem:[%s0] sm:$0xf]
    %v37 = vld [vmem:[%s0 + $0x4] sm:$0xf]
    %v38 = vld [vmem:[%s0 + $0x8] sm:$0xf]
    %v39 = vld [vmem:[%s0 + $0xc] sm:$0xf]
    %v40 = vld [vmem:[%s0 + $0x10] sm:$0xf]
    %v41 = vld [vmem:[%s0 + $0x14] sm:$0xf]
    %v42 = vld [vmem:[%s0 + $0x18] sm:$0xf]
    %v43 = vld [vmem:[%s0 + $0x1c] sm:$0xf]
    %v44 = vld [vmem:[%s0 + $0x20] sm:$0xf]
    %v45 = vld [vmem:[%s0 + $0x24] sm:$0xf]
    %v46 = vld [vmem:[%s0 + $0x28] sm:$0xf]
    %v47 = vld [vmem:[%s0 + $0x2c] sm:$0xf]
    %v48 = vld [vmem:[%s0 + $0x30] sm:$0xf]
    %v49 = vld [vmem:[%s0 + $0x34] sm:$0xf]
    %v50 = vld [vmem:[%s0 + $0x38] sm:$0xf]
    %v51 = vld [vmem:[%s0 + $0x3c] sm:$0xf]
    %v52 = vld [vmem:[%s1] sm:$0xf]
    %v53 = vld [vmem:[%s1 + $0x4] sm:$0xf]
    %v54 = vld [vmem:[%s1 + $0x8] sm:$0xf]
    %v55 = vld [vmem:[%s1 + $0xc] sm:$0xf]
    %v56 = vld [vmem:[%s2] sm:$0x1]
    %v58 = vlaneseq
    %v59 = vshrl.u32 %v58, 7
    %v60 = vsub.s32 0, %v59
    %v61 = vrot.slane %v56, %v60
    %v79 = vunpack.c.l.b16 %v36
    %v80 = vunpack.c.l.b16 %v37
    %v81 = vunpack.c.l.b16 %v38
    %v82 = vunpack.c.l.b16 %v39
    %v83 = vunpack.c.l.b16 %v40
    %v84 = vunpack.c.l.b16 %v41
    %v85 = vunpack.c.l.b16 %v42
    %v86 = vunpack.c.l.b16 %v43
    %v87 = vunpack.c.l.b16 %v44
    %v88 = vunpack.c.l.b16 %v45
    %v89 = vunpack.c.l.b16 %v46
    %v90 = vunpack.c.l.b16 %v47
    %v91 = vunpack.c.l.b16 %v48
    %v92 = vunpack.c.l.b16 %v49
    %v93 = vunpack.c.l.b16 %v50
    %v94 = vunpack.c.l.b16 %v51
    %v95 = vpack.c.b16 %v80, %v79
    %v96 = vpack.c.b16 %v82, %v81
    %v97 = vpack.c.b16 %v84, %v83
    %v98 = vpack.c.b16 %v86, %v85
    %v99 = vpack.c.b16 %v88, %v87
    %v100 = vpack.c.b16 %v90, %v89
    %v101 = vpack.c.b16 %v92, %v91
    %v102 = vpack.c.b16 %v94, %v93
    %v107 = vunpack.c.l.b16 %v52
    %v108 = vunpack.c.l.b16 %v53
    %v109 = vunpack.c.l.b16 %v54
    %v110 = vunpack.c.l.b16 %v55
    %v111 = vpack.c.b16 %v108, %v107
    %v112 = vpack.c.b16 %v110, %v109
    %vm115 = vcmask 261120
    %v117 = vsel %vm115, %v95, 0
    %v120 = vsel %vm115, %v96, 0
    %v123 = vsel %vm115, %v97, 0
    %v126 = vsel %vm115, %v98, 0
    %v129 = vsel %vm115, %v99, 0
    %v132 = vsel %vm115, %v100, 0
    %v135 = vsel %vm115, %v101, 0
    %v138 = vsel %vm115, %v102, 0
    %140 = vmatprep.subr.bf16.mxu0 0
    %141 = vmatpush1.bf16.msra.mxu0 0
    %142 = vmatprep.subr.bf16.mxu0 0
    %143 = vmatpush1.bf16.msra.mxu0 0
    %144 = vmatprep.subr.bf16.mxu0 0
    %145 = vmatpush1.bf16.msra.mxu0 0
    %146 = vmatprep.subr.bf16.mxu0 0
    %147 = vmatpush1.bf16.msra.mxu0 0
    %148 = vmatprep.subr.bf16.mxu0 0
    %149 = vmatpush1.bf16.msra.mxu0 0
    %150 = vmatprep.subr.bf16.mxu0 0
    %151 = vmatpush1.bf16.msra.mxu0 0
    %152 = vmatprep.subr.bf16.mxu0 0
    %153 = vmatpush1.bf16.msra.mxu0 %v112
    %154 = vmatprep.subr.bf16.mxu0 0
    %155 = vmatpush1.bf16.msra.mxu0 %v111
    %156 = vmatprep.subr.bf16.mxu0 0
    %157 = vmatpush2.bf16.msra.mxu0 0
    %158 = vmatprep.subr.bf16.mxu0 0
    %159 = vmatpush2.bf16.msra.mxu0 0
    %160 = vmatprep.subr.bf16.mxu0 0
    %161 = vmatpush2.bf16.msra.mxu0 0
    %162 = vmatprep.subr.bf16.mxu0 0
    %163 = vmatpush2.bf16.msra.mxu0 0
    %164 = vmatprep.subr.bf16.mxu0 0
    %165 = vmatpush2.bf16.msra.mxu0 0
    %166 = vmatprep.subr.bf16.mxu0 0
    %167 = vmatpush2.bf16.msra.mxu0 0
    %168 = vmatprep.subr.bf16.mxu0 0
    %169 = vmatpush2.bf16.msra.mxu0 0
    %170 = vmatprep.subr.bf16.mxu0 0
    %171 = vmatpush2.bf16.msra.mxu0 0
    %172 = vmatprep.mubr.bf16.mxu0 0
    %173 = vmatmul.mubr.bf16.gmra.mxu0 %v117
    %v174 = vpop.f32.mrf.mxu0
    %v175 = vadd.f32 %v61, %v174
    %v176 = vpop.f32.mrf.mxu0
    %v177 = vpop.f32.mrf.mxu0
    %v178 = vadd.f32 %v61, %v177
    %v179 = vpop.f32.mrf.mxu0
    %180 = vmatprep.mubr.bf16.mxu0 0
    %181 = vmatmul.mubr.bf16.gmra.mxu0 %v120
    %v182 = vpop.f32.mrf.mxu0
    %v183 = vadd.f32 %v61, %v182
    %v184 = vpop.f32.mrf.mxu0
    %v185 = vpop.f32.mrf.mxu0
    %v186 = vadd.f32 %v61, %v185
    %v187 = vpop.f32.mrf.mxu0
    %188 = vmatprep.mubr.bf16.mxu0 0
    %189 = vmatmul.mubr.bf16.gmra.mxu0 %v123
    %v190 = vpop.f32.mrf.mxu0
    %v191 = vadd.f32 %v61, %v190
    %v192 = vpop.f32.mrf.mxu0
    %v193 = vpop.f32.mrf.mxu0
    %v194 = vadd.f32 %v61, %v193
    %v195 = vpop.f32.mrf.mxu0
    %196 = vmatprep.mubr.bf16.mxu0 0
    %197 = vmatmul.mubr.bf16.gmra.mxu0 %v126
    %v198 = vpop.f32.mrf.mxu0
    %v199 = vadd.f32 %v61, %v198
    %v200 = vpop.f32.mrf.mxu0
    %v201 = vpop.f32.mrf.mxu0
    %v202 = vadd.f32 %v61, %v201
    %v203 = vpop.f32.mrf.mxu0
    %204 = vmatprep.mubr.bf16.mxu0 0
    %205 = vmatmul.mubr.bf16.gmra.mxu0 %v129
    %v206 = vpop.f32.mrf.mxu0
    %v207 = vadd.f32 %v61, %v206
    %v208 = vpop.f32.mrf.mxu0
    %v209 = vpop.f32.mrf.mxu0
    %v210 = vadd.f32 %v61, %v209
    %v211 = vpop.f32.mrf.mxu0
    %212 = vmatprep.mubr.bf16.mxu0 0
    %213 = vmatmul.mubr.bf16.gmra.mxu0 %v132
    %v214 = vpop.f32.mrf.mxu0
    %v215 = vadd.f32 %v61, %v214
    %v216 = vpop.f32.mrf.mxu0
    %v217 = vpop.f32.mrf.mxu0
    %v218 = vadd.f32 %v61, %v217
    %v219 = vpop.f32.mrf.mxu0
    %220 = vmatprep.mubr.bf16.mxu0 0
    %221 = vmatmul.mubr.bf16.gmra.mxu0 %v135
    %v222 = vpop.f32.mrf.mxu0
    %v223 = vadd.f32 %v61, %v222
    %v224 = vpop.f32.mrf.mxu0
    %v225 = vpop.f32.mrf.mxu0
    %v226 = vadd.f32 %v61, %v225
    %v227 = vpop.f32.mrf.mxu0
    %228 = vmatprep.mubr.bf16.mxu0 0
    %229 = vmatmul.mubr.bf16.gmra.mxu0 %v138
    %v230 = vpop.f32.mrf.mxu0
    %v231 = vadd.f32 %v61, %v230
    %v232 = vpop.f32.mrf.mxu0
    %v233 = vpop.f32.mrf.mxu0
    %v234 = vadd.f32 %v61, %v233
    %v235 = vpop.f32.mrf.mxu0
    %236 = vdwg.mxu0
    %v237 = vmax.f32 %v175, 0.0
    %v238 = vmax.f32 %v178, 0.0
    %v239 = vmax.f32 %v183, 0.0
    %v240 = vmax.f32 %v186, 0.0
    %v241 = vmax.f32 %v191, 0.0
    %v242 = vmax.f32 %v194, 0.0
    %v243 = vmax.f32 %v199, 0.0
    %v244 = vmax.f32 %v202, 0.0
    %v245 = vmax.f32 %v207, 0.0
    %v246 = vmax.f32 %v210, 0.0
    %v247 = vmax.f32 %v215, 0.0
    %v248 = vmax.f32 %v218, 0.0
    %v249 = vmax.f32 %v223, 0.0
    %v250 = vmax.f32 %v226, 0.0
    %v251 = vmax.f32 %v231, 0.0
    %v252 = vmax.f32 %v234, 0.0
    %v253 = vpack.c.bf16 %v238, %v237
    %v254 = vpack.c.bf16 %v240, %v239
    %v255 = vpack.c.bf16 %v242, %v241
    %v256 = vpack.c.bf16 %v244, %v243
    %v257 = vpack.c.bf16 %v246, %v245
    %v258 = vpack.c.bf16 %v248, %v247
    %v259 = vpack.c.bf16 %v250, %v249
    %v260 = vpack.c.bf16 %v252, %v251
    %v261 = vld [vmem:[%s3] sm:$0xf]
    %v262 = vld [vmem:[%s3 + $0x4] sm:$0xf]
    %v263 = vld [vmem:[%s4] sm:$0x1]
    %v265 = vlaneseq
    %v266 = vshrl.u32 %v265, 7
    %v267 = vsub.s32 0, %v266
    %v268 = vrot.slane %v263, %v267
    %v272 = vunpack.c.l.b16 %v261
    %v273 = vunpack.c.l.b16 %v262
    %v274 = vpack.c.b16 %v273, %v272
    %vm276 = vcmask 130048
    %v278 = vsel %vm276, %v253, 0
    %v281 = vsel %vm276, %v254, 0
    %v284 = vsel %vm276, %v255, 0
    %v287 = vsel %vm276, %v256, 0
    %v290 = vsel %vm276, %v257, 0
    %v293 = vsel %vm276, %v258, 0
    %v296 = vsel %vm276, %v259, 0
    %v299 = vsel %vm276, %v260, 0
    %301 = vmatprep.subr.bf16.mxu0 0
    %302 = vmatpush1.bf16.msra.mxu0 0
    %303 = vmatprep.subr.bf16.mxu0 0
    %304 = vmatpush1.bf16.msra.mxu0 0
    %305 = vmatprep.subr.bf16.mxu0 0
    %306 = vmatpush1.bf16.msra.mxu0 0
    %307 = vmatprep.subr.bf16.mxu0 0
    %308 = vmatpush1.bf16.msra.mxu0 0
    %309 = vmatprep.subr.bf16.mxu0 0
    %310 = vmatpush1.bf16.msra.mxu0 0
    %311 = vmatprep.subr.bf16.mxu0 0
    %312 = vmatpush1.bf16.msra.mxu0 0
    %313 = vmatprep.subr.bf16.mxu0 0
    %314 = vmatpush1.bf16.msra.mxu0 0
    %315 = vmatprep.subr.bf16.mxu0 0
    %316 = vmatpush1.bf16.msra.mxu0 %v274
    %317 = vmatprep.subr.bf16.mxu0 0
    %318 = vmatpush2.bf16.msra.mxu0 0
    %319 = vmatprep.subr.bf16.mxu0 0
    %320 = vmatpush2.bf16.msra.mxu0 0
    %321 = vmatprep.subr.bf16.mxu0 0
    %322 = vmatpush2.bf16.msra.mxu0 0
    %323 = vmatprep.subr.bf16.mxu0 0
    %324 = vmatpush2.bf16.msra.mxu0 0
    %325 = vmatprep.subr.bf16.mxu0 0
    %326 = vmatpush2.bf16.msra.mxu0 0
    %327 = vmatprep.subr.bf16.mxu0 0
    %328 = vmatpush2.bf16.msra.mxu0 0
    %329 = vmatprep.subr.bf16.mxu0 0
    %330 = vmatpush2.bf16.msra.mxu0 0
    %331 = vmatprep.subr.bf16.mxu0 0
    %332 = vmatpush2.bf16.msra.mxu0 0
    %333 = vmatprep.mubr.bf16.mxu0 0
    %334 = vmatmul.mubr.bf16.gmra.mxu0 %v278
    %v335 = vpop.f32.mrf.mxu0
    %v336 = vadd.f32 %v268, %v335
    %v337 = vpop.f32.mrf.mxu0
    %v338 = vpop.f32.mrf.mxu0
    %v339 = vadd.f32 %v268, %v338
    %v340 = vpop.f32.mrf.mxu0
    %341 = vmatprep.mubr.bf16.mxu0 0
    %342 = vmatmul.mubr.bf16.gmra.mxu0 %v281
    %v343 = vpop.f32.mrf.mxu0
    %v344 = vadd.f32 %v268, %v343
    %v345 = vpop.f32.mrf.mxu0
    %v346 = vpop.f32.mrf.mxu0
    %v347 = vadd.f32 %v268, %v346
    %v348 = vpop.f32.mrf.mxu0
    %349 = vmatprep.mubr.bf16.mxu0 0
    %350 = vmatmul.mubr.bf16.gmra.mxu0 %v284
    %v351 = vpop.f32.mrf.mxu0
    %v352 = vadd.f32 %v268, %v351
    %v353 = vpop.f32.mrf.mxu0
    %v354 = vpop.f32.mrf.mxu0
    %v355 = vadd.f32 %v268, %v354
    %v356 = vpop.f32.mrf.mxu0
    %357 = vmatprep.mubr.bf16.mxu0 0
    %358 = vmatmul.mubr.bf16.gmra.mxu0 %v287
    %v359 = vpop.f32.mrf.mxu0
    %v360 = vadd.f32 %v268, %v359
    %v361 = vpop.f32.mrf.mxu0
    %v362 = vpop.f32.mrf.mxu0
    %v363 = vadd.f32 %v268, %v362
    %v364 = vpop.f32.mrf.mxu0
    %365 = vmatprep.mubr.bf16.mxu0 0
    %366 = vmatmul.mubr.bf16.gmra.mxu0 %v290
    %v367 = vpop.f32.mrf.mxu0
    %v368 = vadd.f32 %v268, %v367
    %v369 = vpop.f32.mrf.mxu0
    %v370 = vpop.f32.mrf.mxu0
    %v371 = vadd.f32 %v268, %v370
    %v372 = vpop.f32.mrf.mxu0
    %373 = vmatprep.mubr.bf16.mxu0 0
    %374 = vmatmul.mubr.bf16.gmra.mxu0 %v293
    %v375 = vpop.f32.mrf.mxu0
    %v376 = vadd.f32 %v268, %v375
    %v377 = vpop.f32.mrf.mxu0
    %v378 = vpop.f32.mrf.mxu0
    %v379 = vadd.f32 %v268, %v378
    %v380 = vpop.f32.mrf.mxu0
    %381 = vmatprep.mubr.bf16.mxu0 0
    %382 = vmatmul.mubr.bf16.gmra.mxu0 %v296
    %v383 = vpop.f32.mrf.mxu0
    %v384 = vadd.f32 %v268, %v383
    %v385 = vpop.f32.mrf.mxu0
    %v386 = vpop.f32.mrf.mxu0
    %v387 = vadd.f32 %v268, %v386
    %v388 = vpop.f32.mrf.mxu0
    %389 = vmatprep.mubr.bf16.mxu0 0
    %390 = vmatmul.mubr.bf16.gmra.mxu0 %v299
    %v391 = vpop.f32.mrf.mxu0
    %v392 = vadd.f32 %v268, %v391
    %v393 = vpop.f32.mrf.mxu0
    %v394 = vpop.f32.mrf.mxu0
    %v395 = vadd.f32 %v268, %v394
    %v396 = vpop.f32.mrf.mxu0
    %397 = vdwg.mxu0
    %v398 = vmax.f32 %v336, 0.0
    %v399 = vmax.f32 %v339, 0.0
    %v400 = vmax.f32 %v344, 0.0
    %v401 = vmax.f32 %v347, 0.0
    %v402 = vmax.f32 %v352, 0.0
    %v403 = vmax.f32 %v355, 0.0
    %v404 = vmax.f32 %v360, 0.0
    %v405 = vmax.f32 %v363, 0.0
    %v406 = vmax.f32 %v368, 0.0
    %v407 = vmax.f32 %v371, 0.0
    %v408 = vmax.f32 %v376, 0.0
    %v409 = vmax.f32 %v379, 0.0
    %v410 = vmax.f32 %v384, 0.0
    %v411 = vmax.f32 %v387, 0.0
    %v412 = vmax.f32 %v392, 0.0
    %v413 = vmax.f32 %v395, 0.0
    %v414 = vpack.c.bf16 %v399, %v398
    %v415 = vpack.c.bf16 %v401, %v400
    %v416 = vpack.c.bf16 %v403, %v402
    %v417 = vpack.c.bf16 %v405, %v404
    %v418 = vpack.c.bf16 %v407, %v406
    %v419 = vpack.c.bf16 %v409, %v408
    %v420 = vpack.c.bf16 %v411, %v410
    %v421 = vpack.c.bf16 %v413, %v412
    %v422 = vld [vmem:[%s5] sm:$0xf]
    %v423 = vld [vmem:[%s6] sm:$0x1]
    %v425 = vlaneseq
    %v426 = vshrl.u32 %v425, 7
    %v427 = vsub.s32 0, %v426
    %v428 = vrot.slane %v423, %v427
    %vm430 = vcmask 64512
    %v432 = vsel %vm430, %v414, 0
    %v435 = vsel %vm430, %v415, 0
    %v438 = vsel %vm430, %v416, 0
    %v441 = vsel %vm430, %v417, 0
    %v444 = vsel %vm430, %v418, 0
    %v447 = vsel %vm430, %v419, 0
    %v450 = vsel %vm430, %v420, 0
    %v453 = vsel %vm430, %v421, 0
    %vm455 = vcmask 1043456
    %v457 = vsel %vm455, %v422, 0
    %459 = vmatprep.subr.bf16.mxu0 0
    %460 = vmatpush1.bf16.msra.mxu0 0
    %461 = vmatprep.subr.bf16.mxu0 0
    %462 = vmatpush1.bf16.msra.mxu0 0
    %463 = vmatprep.subr.bf16.mxu0 0
    %464 = vmatpush1.bf16.msra.mxu0 0
    %465 = vmatprep.subr.bf16.mxu0 0
    %466 = vmatpush1.bf16.msra.mxu0 0
    %467 = vmatprep.subr.bf16.mxu0 0
    %468 = vmatpush1.bf16.msra.mxu0 0
    %469 = vmatprep.subr.bf16.mxu0 0
    %470 = vmatpush1.bf16.msra.mxu0 0
    %471 = vmatprep.subr.bf16.mxu0 0
    %472 = vmatpush1.bf16.msra.mxu0 0
    %473 = vmatprep.subr.bf16.mxu0 0
    %474 = vmatpush1.bf16.msra.mxu0 %v457
    %475 = vmatprep.subr.bf16.mxu0 0
    %476 = vmatpush2.bf16.msra.mxu0 0
    %477 = vmatprep.subr.bf16.mxu0 0
    %478 = vmatpush2.bf16.msra.mxu0 0
    %479 = vmatprep.subr.bf16.mxu0 0
    %480 = vmatpush2.bf16.msra.mxu0 0
    %481 = vmatprep.subr.bf16.mxu0 0
    %482 = vmatpush2.bf16.msra.mxu0 0
    %483 = vmatprep.subr.bf16.mxu0 0
    %484 = vmatpush2.bf16.msra.mxu0 0
    %485 = vmatprep.subr.bf16.mxu0 0
    %486 = vmatpush2.bf16.msra.mxu0 0
    %487 = vmatprep.subr.bf16.mxu0 0
    %488 = vmatpush2.bf16.msra.mxu0 0
    %489 = vmatprep.subr.bf16.mxu0 0
    %490 = vmatpush2.bf16.msra.mxu0 0
    %491 = vmatprep.mubr.bf16.mxu0 0
    %492 = vmatmul.mubr.bf16.gmra.mxu0 %v432
    %v493 = vpop.f32.mrf.mxu0
    %v494 = vadd.f32 %v428, %v493
    %v495 = vpop.f32.mrf.mxu0
    %v496 = vpop.f32.mrf.mxu0
    %v497 = vadd.f32 %v428, %v496
    %v498 = vpop.f32.mrf.mxu0
    %499 = vmatprep.mubr.bf16.mxu0 0
    %500 = vmatmul.mubr.bf16.gmra.mxu0 %v435
    %v501 = vpop.f32.mrf.mxu0
    %v502 = vadd.f32 %v428, %v501
    %v503 = vpop.f32.mrf.mxu0
    %v504 = vpop.f32.mrf.mxu0
    %v505 = vadd.f32 %v428, %v504
    %v506 = vpop.f32.mrf.mxu0
    %507 = vmatprep.mubr.bf16.mxu0 0
    %508 = vmatmul.mubr.bf16.gmra.mxu0 %v438
    %v509 = vpop.f32.mrf.mxu0
    %v510 = vadd.f32 %v428, %v509
    %v511 = vpop.f32.mrf.mxu0
    %v512 = vpop.f32.mrf.mxu0
    %v513 = vadd.f32 %v428, %v512
    %v514 = vpop.f32.mrf.mxu0
    %515 = vmatprep.mubr.bf16.mxu0 0
    %516 = vmatmul.mubr.bf16.gmra.mxu0 %v441
    %v517 = vpop.f32.mrf.mxu0
    %v518 = vadd.f32 %v428, %v517
    %v519 = vpop.f32.mrf.mxu0
    %v520 = vpop.f32.mrf.mxu0
    %v521 = vadd.f32 %v428, %v520
    %v522 = vpop.f32.mrf.mxu0
    %523 = vmatprep.mubr.bf16.mxu0 0
    %524 = vmatmul.mubr.bf16.gmra.mxu0 %v444
    %v525 = vpop.f32.mrf.mxu0
    %v526 = vadd.f32 %v428, %v525
    %v527 = vpop.f32.mrf.mxu0
    %v528 = vpop.f32.mrf.mxu0
    %v529 = vadd.f32 %v428, %v528
    %v530 = vpop.f32.mrf.mxu0
    %531 = vmatprep.mubr.bf16.mxu0 0
    %532 = vmatmul.mubr.bf16.gmra.mxu0 %v447
    %v533 = vpop.f32.mrf.mxu0
    %v534 = vadd.f32 %v428, %v533
    %v535 = vpop.f32.mrf.mxu0
    %v536 = vpop.f32.mrf.mxu0
    %v537 = vadd.f32 %v428, %v536
    %v538 = vpop.f32.mrf.mxu0
    %539 = vmatprep.mubr.bf16.mxu0 0
    %540 = vmatmul.mubr.bf16.gmra.mxu0 %v450
    %v541 = vpop.f32.mrf.mxu0
    %v542 = vadd.f32 %v428, %v541
    %v543 = vpop.f32.mrf.mxu0
    %v544 = vpop.f32.mrf.mxu0
    %v545 = vadd.f32 %v428, %v544
    %v546 = vpop.f32.mrf.mxu0
    %547 = vmatprep.mubr.bf16.mxu0 0
    %548 = vmatmul.mubr.bf16.gmra.mxu0 %v453
    %v549 = vpop.f32.mrf.mxu0
    %v550 = vadd.f32 %v428, %v549
    %v551 = vpop.f32.mrf.mxu0
    %v552 = vpop.f32.mrf.mxu0
    %v553 = vadd.f32 %v428, %v552
    %v554 = vpop.f32.mrf.mxu0
    %555 = vdwg.mxu0
    %v556 = vmax.f32 %v494, 0.0
    %v557 = vmax.f32 %v497, 0.0
    %v558 = vmax.f32 %v502, 0.0
    %v559 = vmax.f32 %v505, 0.0
    %v560 = vmax.f32 %v510, 0.0
    %v561 = vmax.f32 %v513, 0.0
    %v562 = vmax.f32 %v518, 0.0
    %v563 = vmax.f32 %v521, 0.0
    %v564 = vmax.f32 %v526, 0.0
    %v565 = vmax.f32 %v529, 0.0
    %v566 = vmax.f32 %v534, 0.0
    %v567 = vmax.f32 %v537, 0.0
    %v568 = vmax.f32 %v542, 0.0
    %v569 = vmax.f32 %v545, 0.0
    %v570 = vmax.f32 %v550, 0.0
    %v571 = vmax.f32 %v553, 0.0
    %v572 = vld [vmem:[%s7] sm:$0x1]
    %v573 = vld [vmem:[#allocation2] sm:$0x1]
    %575 = vset.pattern.permute.xlu0 0
    %576 = vperm.xlu0 %575, %v573
    %v577 = vpop.permute.xlu0 %576
    %v579 = vlaneseq
    %v580 = vshrl.u32 %v579, 7
    %v581 = vsub.s32 0, %v580
    %v582 = vrot.slane %v577, %v581
    %vm583 = vcmask 31744
    %v585 = vsel %vm583, %v572, 0
    %v588 = vsel %vm583, %v556, 0
    %v591 = vsel %vm583, %v557, 0
    %v594 = vsel %vm583, %v558, 0
    %v597 = vsel %vm583, %v559, 0
    %v600 = vsel %vm583, %v560, 0
    %v603 = vsel %vm583, %v561, 0
    %v606 = vsel %vm583, %v562, 0
    %v609 = vsel %vm583, %v563, 0
    %v612 = vsel %vm583, %v564, 0
    %v615 = vsel %vm583, %v565, 0
    %v618 = vsel %vm583, %v566, 0
    %v621 = vsel %vm583, %v567, 0
    %v624 = vsel %vm583, %v568, 0
    %v627 = vsel %vm583, %v569, 0
    %v630 = vsel %vm583, %v570, 0
    %v633 = vsel %vm583, %v571, 0
    %635 = vmatprep.subr.mxu0 0.0
    %636 = vmatpush1.xpose.msra.mxu0 %v633
    %637 = vmatprep.subr.mxu0 0.0
    %638 = vmatpush1.xpose.msra.mxu0 %v630
    %639 = vmatprep.subr.mxu0 0.0
    %640 = vmatpush1.xpose.msra.mxu0 %v627
    %641 = vmatprep.subr.mxu0 0.0
    %642 = vmatpush1.xpose.msra.mxu0 %v624
    %643 = vmatprep.subr.mxu0 0.0
    %644 = vmatpush1.xpose.msra.mxu0 %v621
    %645 = vmatprep.subr.mxu0 0.0
    %646 = vmatpush1.xpose.msra.mxu0 %v618
    %647 = vmatprep.subr.mxu0 0.0
    %648 = vmatpush1.xpose.msra.mxu0 %v615
    %649 = vmatprep.subr.mxu0 0.0
    %650 = vmatpush1.xpose.msra.mxu0 %v612
    %651 = vmatprep.subr.mxu0 0.0
    %652 = vmatpush1.xpose.msra.mxu0 %v609
    %653 = vmatprep.subr.mxu0 0.0
    %654 = vmatpush1.xpose.msra.mxu0 %v606
    %655 = vmatprep.subr.mxu0 0.0
    %656 = vmatpush1.xpose.msra.mxu0 %v603
    %657 = vmatprep.subr.mxu0 0.0
    %658 = vmatpush1.xpose.msra.mxu0 %v600
    %659 = vmatprep.subr.mxu0 0.0
    %660 = vmatpush1.xpose.msra.mxu0 %v597
    %661 = vmatprep.subr.mxu0 0.0
    %662 = vmatpush1.xpose.msra.mxu0 %v594
    %663 = vmatprep.subr.mxu0 0.0
    %664 = vmatpush1.xpose.msra.mxu0 %v591
    %665 = vmatprep.subr.mxu0 0.0
    %666 = vmatpush1.xpose.msra.mxu0 %v588
    %667 = vmatprep.subr.mxu0 0.0
    %668 = vmatpush2.xpose.msra.mxu0 0.0
    %669 = vmatprep.subr.mxu0 0.0
    %670 = vmatpush2.xpose.msra.mxu0 0.0
    %671 = vmatprep.subr.mxu0 0.0
    %672 = vmatpush2.xpose.msra.mxu0 0.0
    %673 = vmatprep.subr.mxu0 0.0
    %674 = vmatpush2.xpose.msra.mxu0 0.0
    %675 = vmatprep.subr.mxu0 0.0
    %676 = vmatpush2.xpose.msra.mxu0 0.0
    %677 = vmatprep.subr.mxu0 0.0
    %678 = vmatpush2.xpose.msra.mxu0 0.0
    %679 = vmatprep.subr.mxu0 0.0
    %680 = vmatpush2.xpose.msra.mxu0 0.0
    %681 = vmatprep.subr.mxu0 0.0
    %682 = vmatpush2.xpose.msra.mxu0 0.0
    %683 = vmatprep.subr.mxu0 0.0
    %684 = vmatpush2.xpose.msra.mxu0 0.0
    %685 = vmatprep.subr.mxu0 0.0
    %686 = vmatpush2.xpose.msra.mxu0 0.0
    %687 = vmatprep.subr.mxu0 0.0
    %688 = vmatpush2.xpose.msra.mxu0 0.0
    %689 = vmatprep.subr.mxu0 0.0
    %690 = vmatpush2.xpose.msra.mxu0 0.0
    %691 = vmatprep.subr.mxu0 0.0
    %692 = vmatpush2.xpose.msra.mxu0 0.0
    %693 = vmatprep.subr.mxu0 0.0
    %694 = vmatpush2.xpose.msra.mxu0 0.0
    %695 = vmatprep.subr.mxu0 0.0
    %696 = vmatpush2.xpose.msra.mxu0 0.0
    %697 = vmatprep.subr.mxu0 0.0
    %698 = vmatpush2.xpose.msra.mxu0 0.0
    %699 = vmatprep.mubr.f32.mxu0 0.0
    %700 = vmatmul.mubr.f32.gmra.mxu0 %v585
    %v701 = vpop.f32.mrf.mxu0
    %v702 = vadd.f32 %v582, %v701
    %v703 = vpop.f32.mrf.mxu0
    %704 = vdwg.mxu0
    %705 = vst [vmem:[#allocation3] sm:$0x1] %v702
    // Predicated region
    $region38: #{tpu_custom_call.1} parent=1 // pred_check
      _
    $region39: #{tpu_custom_call.1} parent=1 // pred_check_branch
      %707 = sbr.rel (0) target = $region41
    $region40: #{tpu_custom_call.1} parent=1 // pred_region
      %s709 = ssub.s32 16, 16
      %710 = vsyncadd [#allocation4], %s709
      %s712 = sshll.u32 [#allocation3], 4
      %s713 = int_to_ptr.vmem [resolvable:$true] %s712
      %715 = dma.vmem_to_hbm [thread:$0]  %s713, 16, %s9, [#allocation4]
    $region41: #{tpu_custom_call.1} parent=1 // pred_fallthru
      _
    // Predicated region
    $region42: #{tpu_custom_call.1} parent=1 // pred_check
      _
    $region43: #{tpu_custom_call.1} parent=1 // pred_check_branch
      %717 = sbr.rel (0) target = $region45
    $region44: #{tpu_custom_call.1} parent=1 // pred_region
      %718 = dma.done [#allocation4], 16
    $region45: #{tpu_custom_call.1} parent=1 // pred_fallthru
      _
    %719 = vsyncpa [#allocation4], 1

</llo_original>
